<compile_context>
chip_gen: v6e
topology: v6e:2x2x1
jax: 0.10.0
libtpu: 0.0.40
codegen_flags: <defaults>
</compile_context>

<pallas_src>
import jax
import jax.numpy as jnp
from jax.experimental import pallas as pl
from jax.experimental.pallas import tpu as pltpu


def _hbm_copy_kernel(x_hbm, o_hbm, sem):
    # Single whole-array HBM->HBM DMA. Both refs live in HBM (memory_space=ANY),
    # so there is no VMEM staging and no layout/tiling constraint.
    cp = pltpu.make_async_copy(x_hbm, o_hbm, sem)
    cp.start()
    cp.wait()


def _pallas_identity_copy(x):
    """Materializes `x` into a fresh buffer via one HBM->HBM DMA."""
    nbytes = x.size * x.dtype.itemsize
    return pl.pallas_call(
        _hbm_copy_kernel,
        out_shape=jax.ShapeDtypeStruct(x.shape, x.dtype),
        in_specs=[pl.BlockSpec(memory_space=pl.ANY)],
        out_specs=pl.BlockSpec(memory_space=pl.ANY),
        scratch_shapes=[pltpu.SemaphoreType.DMA(())],
        # Pure-bandwidth kernel: tell XLA it is 0 flops, 2x bytes of traffic.
        cost_estimate=pl.CostEstimate(
            flops=0, transcendentals=0, bytes_accessed=2 * nbytes),
    )(x)


class View:
    """JAX/Pallas equivalent of torchbnn View(shape): x.view((-1,) + shape).

    materialize=True runs the Pallas HBM->HBM copy kernel (demonstration /
    when a fresh buffer is desired); materialize=False is a pure metadata
    reshape, which matches torch .view cost (free) exactly.
    """

    def __init__(self, shape, materialize=True):
        self.shape = tuple(int(s) for s in shape)
        self.materialize = materialize

    def __call__(self, x):
        total = x.size
        tail = 1
        for s in self.shape:
            tail *= s
        assert total % tail == 0, "input size not divisible by prod(shape)"
        lead = total // tail

        # Row-major reshape == torch .view on contiguous tensors. Free in XLA.
        out = jnp.reshape(x, (lead,) + self.shape)

        if self.materialize:
            # TODO(synk): torch .view aliases storage (no copy); a materialized
            # copy cannot reproduce that aliasing, only the values.
            out = _pallas_identity_copy(out)
        return out


if __name__ == "__main__":
    key = jax.random.PRNGKey(0)
    # Small NCHW-like input, consistent with typical usage of View in torchbnn:
    # flatten conv features: x [2, 4, 16, 16] -> view((-1, 4*16*16)).
    x = jax.random.normal(key, (2, 4, 16, 16), dtype=jnp.float32)

    view = View((4 * 16 * 16,))
    y = view(x)
    y = jax.block_until_ready(y)

    # Reference check against plain reshape (exact semantics of torch .view).
    ref = jnp.reshape(x, (-1, 4 * 16 * 16))
    assert y.shape == ref.shape == (2, 1024)
    assert y.dtype == x.dtype
    assert bool(jnp.array_equal(y, ref))

    # Also exercise an odd (non-multiple-of-128) size: no padding/masking
    # is needed because the DMA path has no BlockSpec layout constraints.
    x2 = jax.random.normal(jax.random.PRNGKey(0), (3, 5, 7), dtype=jnp.float32)
    y2 = jax.block_until_ready(View((5 * 7,))(x2))
    assert bool(jnp.array_equal(y2, jnp.reshape(x2, (-1, 35))))

    print("KERNEL_OK")
</pallas_src>

<mosaic_0001>
module attributes {stable_mosaic.version = 11 : i64} {
  func.func @_hbm_copy_kernel(%arg0: memref<2x1024xf32, #tpu.memory_space<any>>, %arg1: memref<2x1024xf32, #tpu.memory_space<any>>, %arg2: memref<!tpu.dma_semaphore, #tpu.memory_space<semaphore_mem>>) attributes {dimension_semantics = [], scalar_prefetch = 0 : i64, scratch_operands = 1 : i64, tpu.core_type = #tpu.core_type<tc>} {
    tpu.enqueue_dma source(%arg0 : memref<2x1024xf32, #tpu.memory_space<any>>) target(%arg1 : memref<2x1024xf32, #tpu.memory_space<any>>) target_semaphore(%arg2 : memref<!tpu.dma_semaphore, #tpu.memory_space<semaphore_mem>>)
    tpu.wait_dma2 semaphore(%arg2 : memref<!tpu.dma_semaphore, #tpu.memory_space<semaphore_mem>>) src(%arg0 : memref<2x1024xf32, #tpu.memory_space<any>>) dst(%arg1 : memref<2x1024xf32, #tpu.memory_space<any>>)
    return
  }
}

</mosaic_0001>

<llo_original>
// kernel: tpu_custom_call.1
$region0: #{tpu_custom_call.1}
  #allocation0 [shape = 'u32[]', space=smem, size = 0x4, offset = 0x4, fixed_abs, tag = 'smem constant byte address 0x4 - core index']
  #allocation1 [shape = 'u32[144,128]{1,0:T(1,128)}', space=vmem, size = 0x12000, scoped, tag = 'internal scratch']
  #allocation2 [shape = 's32[1]{0}', space=sflag, size = 0x4, scoped, tag = 'scratch operand']
  #allocation3 [shape = 's32[]', space=sflag, size = 0x4, offset = 0, fixed_abs, tag = 'sflag constant byte address 0x0 - dummy sync flag']
  #allocation4 [shape = 'u32[0]{0}', space=smem, size = 0, offset = 0, fixed_abs, tag = 'smem constant byte address 0x0 - null']
  %s0 = inlined_call_operand.hbm [shape: f32[2,1024], index: 0, kind: input, shape index: {}]
  %s1 = inlined_call_operand.hbm [shape: f32[2,1024], index: 1, kind: output, shape index: {}]
  %s2 = sld [smem:[#allocation0]]
  $region2: #{tpu_custom_call.1} parent=0
    _
  %s4 = ssub.s32 1, %s2
  %s5 = scalar_select 0, %s4, %s2
  %s7 = sshll.u32 1, 14
  %s8 = sxor.u32 4294967295, %s7
  %12 = dma.general %s0, 256, %s1, [#allocation2], 131072, [#allocation4], 0, 0
  %s13 = smul.u32 2, 1
  %s14 = smul.u32 %s13, 8
  %s15 = sshll.u32 %s14, 4
  %16 = dma.done [#allocation2], %s15
  %17 = vsyncmov [#allocation2]
  %s18 = vpop.sfrf %17
  %p19 = scmp.eq.s32.totalorder %s18, 0
  %p20 = pneg %p19
  %22 = shalt.err (%p20)

</llo_original>
